<compile_context>
chip_gen: v5e
topology: v5e:2x2
jax: 0.10.0
libtpu: 0.0.40
codegen_flags: <defaults>
</compile_context>

<pallas_src>
import functools
import math

import jax
import jax.numpy as jnp
from jax import lax
from jax.experimental import pallas as pl
from jax.experimental.pallas import tpu as pltpu

LANES = 128
SUBLANES = 8
TARGET_BLOCK_BYTES = 2 * 1024 * 1024    # ~2 MiB per input block per buffer
VMEM_LIMIT_BYTES = 32 * 1024 * 1024     # fits every TPU generation's physical VMEM


# ---------------------------------------------------------------------------
# small integer helpers
# ---------------------------------------------------------------------------
def _round_down(x, m):
    return (x // m) * m


def _round_up(x, m):
    return (x + m - 1) // m * m


def _pick_tm(rows, itemsize):
    """Rows per grid step.

    ~TARGET_BLOCK_BYTES per input block, a multiple of 8, and small enough that
    the grid has >= 2 steps whenever rows >= 16 so the 'parallel' grid axis can
    span both v7x TensorCores (the extra ~0.35us step is noise on 1-TC chips).
    """
    tm = max(SUBLANES, _round_down(TARGET_BLOCK_BYTES // (LANES * itemsize), SUBLANES))
    cap = max(SUBLANES, _round_down(rows, SUBLANES))
    tm = min(tm, cap)
    if rows >= 2 * SUBLANES:
        tm = min(tm, max(SUBLANES, _round_up((rows + 1) // 2, SUBLANES)))
    return tm


def _aligned_prefix(x):
    """Flatten; return (slab[rows,128] over the largest 8x128-aligned prefix, tail).

    No full-array pad/copy: the <= 1023-element tail is handled in the wrapper.
    """
    flat = x.reshape(-1)                       # contiguous reshape, no copy
    n = flat.shape[0]
    n_main = _round_down(n, SUBLANES * LANES)
    main = flat[:n_main].reshape(-1, LANES) if n_main > 0 else None
    tail = flat[n_main:] if n_main < n else None
    return main, tail


# ---------------------------------------------------------------------------
# Kernels
# ---------------------------------------------------------------------------
def _block_partial_sum(vals, tm):
    # (tm,128) -> (tm//8, 8, 128) is a pure sublane-split reshape; summing the
    # leading axis is vreg-wise VPU adds (no XLU cross-lane reduce per step).
    return jnp.sum(vals.reshape(tm // SUBLANES, SUBLANES, LANES), axis=0)


def _charb_partial_kernel(p_ref, t_ref, out_ref, *, eps, tm, rows_last, needs_mask):
    """out = (8,128) partial sums of sqrt((p - t)^2 + eps) over a (tm,128) tile."""
    p = p_ref[...].astype(jnp.float32)
    t = t_ref[...].astype(jnp.float32)
    d = p - t
    l = jnp.sqrt(d * d + eps)

    def _write(vals):
        out_ref[...] = _block_partial_sum(vals, tm)

    if needs_mask:
        is_last = pl.program_id(0) == pl.num_programs(0) - 1

        @pl.when(is_last)
        def _():
            # mask only the final grid step, with block-local row offsets
            row = lax.broadcasted_iota(jnp.int32, (tm, LANES), 0)
            _write(jnp.where(row < rows_last, l, 0.0))

        @pl.when(jnp.logical_not(is_last))
        def _():
            _write(l)
    else:
        _write(l)


def _charb_weighted_partial_kernel(p_ref, t_ref, w_ref, num_ref, wsum_ref, *,
                                   eps, tm, rows_last, needs_mask):
    """Partial sums of l*w and of w for a full-shape (streamed) weight."""
    p = p_ref[...].astype(jnp.float32)
    t = t_ref[...].astype(jnp.float32)
    w = w_ref[...].astype(jnp.float32)
    d = p - t
    lw = jnp.sqrt(d * d + eps) * w

    def _write(lw_v, w_v):
        num_ref[...] = _block_partial_sum(lw_v, tm)
        wsum_ref[...] = _block_partial_sum(w_v, tm)

    if needs_mask:
        is_last = pl.program_id(0) == pl.num_programs(0) - 1

        @pl.when(is_last)
        def _():
            row = lax.broadcasted_iota(jnp.int32, (tm, LANES), 0)
            valid = row < rows_last
            _write(jnp.where(valid, lw, 0.0), jnp.where(valid, w, 0.0))

        @pl.when(jnp.logical_not(is_last))
        def _():
            _write(lw, w)
    else:
        _write(lw, w)


def _charb_bcast_weight_kernel(p_ref, t_ref, w_ref, num_ref, *,
                               eps, tm, rows_last, needs_mask):
    """Broadcast-weight path.

    Grid = (outer, inner_steps, mid); the weight block index ignores `mid`, so
    it stays resident in VMEM across the innermost (reduction) axis and is
    fetched from HBM exactly once.  num_ref accumulates across `mid`.
    """
    m = pl.program_id(2)
    p = p_ref[...].reshape(tm, LANES).astype(jnp.float32)
    t = t_ref[...].reshape(tm, LANES).astype(jnp.float32)
    w = w_ref[...].reshape(tm, LANES).astype(jnp.float32)
    d = p - t
    lw = jnp.sqrt(d * d + eps) * w

    @pl.when(m == 0)
    def _():
        num_ref[...] = jnp.zeros_like(num_ref)

    def _accum(vals):
        num_ref[...] += _block_partial_sum(vals, tm)

    if needs_mask:
        is_last = pl.program_id(1) == pl.num_programs(1) - 1

        @pl.when(is_last)
        def _():
            row = lax.broadcasted_iota(jnp.int32, (tm, LANES), 0)
            _accum(jnp.where(row < rows_last, lw, 0.0))

        @pl.when(jnp.logical_not(is_last))
        def _():
            _accum(lw)
    else:
        _accum(lw)


# ---------------------------------------------------------------------------
# pallas_call wrappers
# ---------------------------------------------------------------------------
def _unweighted_sums(pred, target, eps):
    p_main, p_tail = _aligned_prefix(pred)
    t_main, t_tail = _aligned_prefix(target)
    total = jnp.float32(0.0)
    if p_main is not None:
        rows = p_main.shape[0]
        itemsize = max(jnp.dtype(pred.dtype).itemsize, jnp.dtype(target.dtype).itemsize)
        tm = _pick_tm(rows, itemsize)
        steps = int(pl.cdiv(rows, tm))
        rows_last = rows - (steps - 1) * tm
        kern = functools.partial(_charb_partial_kernel, eps=eps, tm=tm,
                                 rows_last=rows_last, needs_mask=(rows_last != tm))
        in_spec = pl.BlockSpec((tm, LANES), lambda i: (i, 0))
        out_spec = pl.BlockSpec((SUBLANES, LANES), lambda i: (i, 0))
        nbytes = (p_main.size * jnp.dtype(p_main.dtype).itemsize
                  + t_main.size * jnp.dtype(t_main.dtype).itemsize
                  + steps * SUBLANES * LANES * 4)
        partials = pl.pallas_call(
            kern,
            out_shape=jax.ShapeDtypeStruct((steps * SUBLANES, LANES), jnp.float32),
            grid_spec=pltpu.PrefetchScalarGridSpec(
                num_scalar_prefetch=0,
                grid=(steps,),
                in_specs=[in_spec, in_spec],
                out_specs=out_spec,
            ),
            compiler_params=pltpu.CompilerParams(
                dimension_semantics=("parallel",),
                vmem_limit_bytes=VMEM_LIMIT_BYTES),
            cost_estimate=pl.CostEstimate(
                flops=int(4 * rows * LANES),
                transcendentals=int(rows * LANES),
                bytes_accessed=int(nbytes)),
        )(p_main, t_main)
        total = total + jnp.sum(partials)
    if p_tail is not None:
        d = p_tail.astype(jnp.float32) - t_tail.astype(jnp.float32)
        total = total + jnp.sum(jnp.sqrt(d * d + eps))
    return total


def _weighted_same_shape(pred, target, weight, eps):
    """weight has exactly pred's shape: stream it alongside pred/target."""
    p_main, p_tail = _aligned_prefix(pred)
    t_main, t_tail = _aligned_prefix(target)
    w_main, w_tail = _aligned_prefix(weight)
    num = jnp.float32(0.0)
    wsum = jnp.float32(0.0)
    if p_main is not None:
        rows = p_main.shape[0]
        itemsize = max(jnp.dtype(a.dtype).itemsize for a in (pred, target, weight))
        tm = _pick_tm(rows, itemsize)
        steps = int(pl.cdiv(rows, tm))
        rows_last = rows - (steps - 1) * tm
        kern = functools.partial(_charb_weighted_partial_kernel, eps=eps, tm=tm,
                                 rows_last=rows_last, needs_mask=(rows_last != tm))
        in_spec = pl.BlockSpec((tm, LANES), lambda i: (i, 0))
        out_spec = pl.BlockSpec((SUBLANES, LANES), lambda i: (i, 0))
        part = jax.ShapeDtypeStruct((steps * SUBLANES, LANES), jnp.float32)
        nbytes = sum(a.size * jnp.dtype(a.dtype).itemsize for a in (p_main, t_main, w_main))
        num_p, wsum_p = pl.pallas_call(
            kern,
            out_shape=(part, part),
            grid_spec=pltpu.PrefetchScalarGridSpec(
                num_scalar_prefetch=0,
                grid=(steps,),
                in_specs=[in_spec, in_spec, in_spec],
                out_specs=(out_spec, out_spec),
            ),
            compiler_params=pltpu.CompilerParams(
                dimension_semantics=("parallel",),
                vmem_limit_bytes=VMEM_LIMIT_BYTES),
            cost_estimate=pl.CostEstimate(
                flops=int(6 * rows * LANES),
                transcendentals=int(rows * LANES),
                bytes_accessed=int(nbytes + 2 * steps * SUBLANES * LANES * 4)),
        )(p_main, t_main, w_main)
        num = num + jnp.sum(num_p)
        wsum = wsum + jnp.sum(wsum_p)
    if p_tail is not None:
        d = p_tail.astype(jnp.float32) - t_tail.astype(jnp.float32)
        wt = w_tail.astype(jnp.float32)
        num = num + jnp.sum(jnp.sqrt(d * d + eps) * wt)
        wsum = wsum + jnp.sum(wt)
    return num, wsum


def _weighted_bcast(pred, target, weight, eps, outer, mid, inner_rows):
    """weight broadcasts over a contiguous block of size-1 dims (e.g. (N,1,H,W))."""
    p4 = pred.reshape(outer, mid, inner_rows, LANES)
    t4 = target.reshape(outer, mid, inner_rows, LANES)
    w3 = weight.reshape(outer, inner_rows, LANES)
    itemsize = max(jnp.dtype(a.dtype).itemsize for a in (pred, target, weight))
    tm = _pick_tm(inner_rows, itemsize)
    inner_steps = int(pl.cdiv(inner_rows, tm))
    rows_last = inner_rows - (inner_steps - 1) * tm
    kern = functools.partial(_charb_bcast_weight_kernel, eps=eps, tm=tm,
                             rows_last=rows_last, needs_mask=(rows_last != tm))
    pt_spec = pl.BlockSpec((1, 1, tm, LANES), lambda o, s, m: (o, m, s, 0))
    w_spec = pl.BlockSpec((1, tm, LANES), lambda o, s, m: (o, s, 0))
    out_spec = pl.BlockSpec((SUBLANES, LANES),
                            lambda o, s, m: (o * inner_steps + s, 0))
    nbytes = ((pred.size + target.size) * jnp.dtype(pred.dtype).itemsize
              + weight.size * jnp.dtype(weight.dtype).itemsize)
    partials = pl.pallas_call(
        kern,
        out_shape=jax.ShapeDtypeStruct((outer * inner_steps * SUBLANES, LANES),
                                       jnp.float32),
        grid_spec=pltpu.PrefetchScalarGridSpec(
            num_scalar_prefetch=0,
            grid=(outer, inner_steps, mid),
            in_specs=[pt_spec, pt_spec, w_spec],
            out_specs=out_spec,
        ),
        compiler_params=pltpu.CompilerParams(
            dimension_semantics=("parallel", "parallel", "arbitrary"),
            vmem_limit_bytes=VMEM_LIMIT_BYTES),
        cost_estimate=pl.CostEstimate(
            flops=int(6 * pred.size),
            transcendentals=int(pred.size),
            bytes_accessed=int(nbytes)),
    )(p4, t4, w3)
    return jnp.sum(partials)


def _bcast_factorization(pred_shape, weight_shape):
    """(outer, mid, inner) if weight differs from pred only on one contiguous
    run of size-1 dims; else None."""
    if len(pred_shape) != len(weight_shape):
        return None
    bdims = [i for i, (p, w) in enumerate(zip(pred_shape, weight_shape)) if w != p]
    if not bdims:
        return None
    if any(weight_shape[i] != 1 for i in bdims):
        return None                                   # not broadcastable
    if bdims != list(range(bdims[0], bdims[-1] + 1)):
        return None                                   # non-contiguous broadcast dims
    lo, hi = bdims[0], bdims[-1] + 1
    outer = int(math.prod(pred_shape[:lo])) if lo > 0 else 1
    mid = int(math.prod(pred_shape[lo:hi]))
    inner = int(math.prod(pred_shape[hi:])) if hi < len(pred_shape) else 1
    return outer, mid, inner


def _basicsr_weight_denominator(pred, weight):
    """basicsr weight_reduce_loss 'mean' denominator from the ORIGINAL weight."""
    wsum = jnp.sum(weight.astype(jnp.float32))
    if (weight.ndim >= 2 and pred.ndim >= 2
            and weight.shape[1] == 1 and pred.shape[1] > 1):
        wsum = wsum * pred.shape[1]
    return wsum


def _weighted_sums(pred, target, weight, eps):
    if weight.shape == pred.shape:
        return _weighted_same_shape(pred, target, weight, eps)   # wsum from kernel
    fact = _bcast_factorization(pred.shape, weight.shape)
    if fact is not None:
        outer, mid, inner = fact
        if inner % LANES == 0 and (inner // LANES) >= SUBLANES:
            num = _weighted_bcast(pred, target, weight, eps, outer, mid,
                                  inner // LANES)
            return num, _basicsr_weight_denominator(pred, weight)
    # TODO(synk): uncommon broadcast layouts fall back to materializing the
    # broadcast weight in HBM (extra weight bytes of traffic).
    w_full = jnp.broadcast_to(weight, pred.shape)
    num, _ = _weighted_same_shape(pred, target, w_full, eps)
    return num, _basicsr_weight_denominator(pred, weight)


# ---------------------------------------------------------------------------
# Public API
# ---------------------------------------------------------------------------
@functools.partial(jax.jit, static_argnames=("loss_weight", "eps", "reduction"))
def _charbonnier_jit(pred, target, weight, loss_weight, eps, reduction):
    lw = jnp.float32(loss_weight)
    if weight is None:
        total = _unweighted_sums(pred, target, eps)
        if reduction == "sum":
            return lw * total
        return lw * (total / pred.size)
    num, denom = _weighted_sums(pred, target, weight, eps)
    if reduction == "sum":
        return lw * num                    # basicsr: sum after applying weight
    return lw * (num / denom)


def charbonnier_loss(pred, target, weight=None, loss_weight=1.0,
                     eps=1e-12, reduction="mean"):
    """CharbonnierLoss.forward equivalent."""
    if reduction not in ("none", "mean", "sum"):
        raise ValueError(f"Unsupported reduction mode: {reduction}. "
                         f"Supported ones are: ['none', 'mean', 'sum']")
    if reduction == "none":
        # TODO(synk): reduction='none' (full elementwise output) not implemented;
        # the basicsr module only advertises 'mean' (_reduction_modes = ['mean']).
        raise NotImplementedError("reduction='none' is not implemented")
    return _charbonnier_jit(pred, target, weight, float(loss_weight),
                            float(eps), reduction)


class CharbonnierLoss:
    """Charbonnier loss (robust L1); mirrors the basicsr module interface."""

    def __init__(self, loss_weight=1.0, reduction="mean", eps=1e-12):
        if reduction not in ("none", "mean", "sum"):
            raise ValueError(f"Unsupported reduction mode: {reduction}. "
                             f"Supported ones are: ['none', 'mean', 'sum']")
        self.loss_weight = loss_weight
        self.reduction = reduction
        self.eps = eps

    def __call__(self, pred, target, weight=None, **kwargs):
        return charbonnier_loss(pred, target, weight=weight,
                                loss_weight=self.loss_weight,
                                eps=self.eps, reduction=self.reduction)


# ---------------------------------------------------------------------------
# Demo / self-check
# ---------------------------------------------------------------------------
if __name__ == "__main__":
    key = jax.random.PRNGKey(0)
    k1, k2, k3, k4, k5, k6, k7 = jax.random.split(key, 7)

    N, C, H, W = 2, 4, 16, 16
    pred = jax.random.normal(k1, (N, C, H, W), dtype=jnp.float32)
    target = jax.random.normal(k2, (N, C, H, W), dtype=jnp.float32)
    weight = jax.random.uniform(k3, (N, C, H, W), dtype=jnp.float32)

    eps = 1e-12
    loss_fn = CharbonnierLoss(loss_weight=1.0, reduction="mean", eps=eps)

    l_ref = jnp.sqrt((pred - target) ** 2 + eps)

    # unweighted mean
    out = jax.block_until_ready(loss_fn(pred, target))
    ref = jnp.mean(l_ref)
    assert jnp.allclose(out, ref, rtol=1e-5, atol=1e-6), (out, ref)

    # weighted mean (full-shape weight): sum(l * w) / sum(w)
    out_w = jax.block_until_ready(loss_fn(pred, target, weight=weight))
    ref_w = jnp.sum(l_ref * weight) / jnp.sum(weight)
    assert jnp.allclose(out_w, ref_w, rtol=1e-5, atol=1e-6), (out_w, ref_w)

    # sum reduction
    out_s = jax.block_until_ready(
        charbonnier_loss(pred, target, reduction="sum", eps=eps))
    ref_s = jnp.sum(l_ref)
    assert jnp.allclose(out_s, ref_s, rtol=1e-5, atol=1e-3), (out_s, ref_s)

    # channel-broadcast (N,1,H,W) weight: no broadcast materialization in HBM
    Hb, Wb = 32, 32
    pb = jax.random.normal(k4, (N, C, Hb, Wb), dtype=jnp.float32)
    tb = jax.random.normal(k5, (N, C, Hb, Wb), dtype=jnp.float32)
    wb = jax.random.uniform(k6, (N, 1, Hb, Wb), dtype=jnp.float32)
    out_b = jax.block_until_ready(loss_fn(pb, tb, weight=wb))
    lb = jnp.sqrt((pb - tb) ** 2 + eps)
    ref_b = jnp.sum(lb * wb) / (jnp.sum(wb) * C)
    assert jnp.allclose(out_b, ref_b, rtol=1e-5, atol=1e-6), (out_b, ref_b)

    # ragged shape (exercises aligned-prefix kernel + jnp tail, masked last block)
    pr = jax.random.normal(k7, (1, 3, 11, 100), dtype=jnp.float32)
    tr = jnp.zeros_like(pr)
    out_r = jax.block_until_ready(loss_fn(pr, tr))
    ref_r = jnp.mean(jnp.sqrt(pr * pr + eps))
    assert jnp.allclose(out_r, ref_r, rtol=1e-5, atol=1e-6), (out_r, ref_r)

    # bf16 inputs stay bf16 in HBM; kernel upcasts on the VPU
    pred_bf = pred.astype(jnp.bfloat16)
    target_bf = target.astype(jnp.bfloat16)
    out_bf = jax.block_until_ready(loss_fn(pred_bf, target_bf))
    ref_bf = jnp.mean(jnp.sqrt(
        (pred_bf.astype(jnp.float32) - target_bf.astype(jnp.float32)) ** 2 + eps))
    assert jnp.allclose(out_bf, ref_bf, rtol=1e-4, atol=1e-4), (out_bf, ref_bf)

    print("KERNEL_OK")
</pallas_src>

<mosaic_0001>
module attributes {stable_mosaic.version = 11 : i64} {
  func.func @_charb_partial_kernel(%arg0: i32, %arg1: memref<8x128xf32, #tpu.memory_space<vmem>>, %arg2: memref<8x128xf32, #tpu.memory_space<vmem>>, %arg3: memref<8x128xf32, #tpu.memory_space<vmem>>) attributes {dimension_semantics = [#tpu.dimension_semantics<parallel>], iteration_bounds = array<i64: 2>, scalar_prefetch = 0 : i64, scratch_operands = 0 : i64, tpu.core_type = #tpu.core_type<tc>, window_params = [{transform_indices = @transform_0, window_bounds = array<i64: 8, 128>}, {transform_indices = @transform_1, window_bounds = array<i64: 8, 128>}, {transform_indices = @transform_2, window_bounds = array<i64: 8, 128>}]} {
    %c0 = arith.constant 0 : index
    %c0_0 = arith.constant 0 : index
    %0 = vector.load %arg1[%c0, %c0_0] : memref<8x128xf32, #tpu.memory_space<vmem>>, vector<8x128xf32>
    %c0_1 = arith.constant 0 : index
    %c0_2 = arith.constant 0 : index
    %1 = vector.load %arg2[%c0_1, %c0_2] : memref<8x128xf32, #tpu.memory_space<vmem>>, vector<8x128xf32>
    %2 = arith.subf %0, %1 : vector<8x128xf32>
    %3 = arith.mulf %2, %2 : vector<8x128xf32>
    %cst = arith.constant 9.99999996E-13 : f32
    %4 = vector.broadcast %cst : f32 to vector<8x128xf32>
    %5 = arith.addf %3, %4 : vector<8x128xf32>
    %6 = math.sqrt %5 : vector<8x128xf32>
    %7 = vector.shape_cast %6 : vector<8x128xf32> to vector<1x8x128xf32>
    %cst_3 = arith.constant dense<0.000000e+00> : vector<8x128xf32>
    %8 = vector.multi_reduction <add>, %7, %cst_3 [0] : vector<1x8x128xf32> to vector<8x128xf32>
    %c0_4 = arith.constant 0 : index
    %c0_5 = arith.constant 0 : index
    %9 = vector.load %arg3[%c0_4, %c0_5] : memref<8x128xf32, #tpu.memory_space<vmem>>, vector<8x128xf32>
    tpu.vector_store %arg3[%c0_4, %c0_5], %8 {strides = array<i32>} : memref<8x128xf32, #tpu.memory_space<vmem>>, vector<8x128xf32>,
    return
  }
  func.func @transform_0(%arg0: i32) -> (i32, i32) {
    %c0_i32 = arith.constant 0 : i32
    %c0_i32_0 = arith.constant 0 : i32
    return %arg0, %c0_i32 : i32, i32
  }
  func.func @transform_1(%arg0: i32) -> (i32, i32) {
    %c0_i32 = arith.constant 0 : i32
    %c0_i32_0 = arith.constant 0 : i32
    return %arg0, %c0_i32 : i32, i32
  }
  func.func @transform_2(%arg0: i32) -> (i32, i32) {
    %c0_i32 = arith.constant 0 : i32
    %c0_i32_0 = arith.constant 0 : i32
    return %arg0, %c0_i32 : i32, i32
  }
}

</mosaic_0001>

<llo_original>
// kernel: _charbonnier_jit.1
$region0: #{_charbonnier_jit.1}
  #allocation0 [shape = 'u32[]', space=smem, size = 0x4, offset = 0x4, fixed_abs, tag = 'smem constant byte address 0x4 - core index']
  #allocation1 [shape = 'u32[72,128]{1,0:T(1,128)}', space=vmem, size = 0x9000, scoped, tag = 'internal scratch']
  %s0 = inlined_call_operand.vmem [shape: f32[16,128], index: 0, kind: input, shape index: {}]
  %s1 = inlined_call_operand.vmem [shape: f32[16,128], index: 1, kind: input, shape index: {}]
  %s2 = inlined_call_operand.vmem [shape: f32[16,128], index: 2, kind: output, shape index: {}]
  %s3 = sld [smem:[#allocation0]]
  $region41: #{_charbonnier_jit.1} parent=0
    _
  %s5 = ssub.s32 1, %s3
  %s6 = scalar_select 0, %s5, %s3
  loop: start=0, step=1, limit=4
  $region2: #{_charbonnier_jit.1} parent=0 // loop_pre_header
    _
  $region3: #{_charbonnier_jit.1} parent=0 // loop_header
    %s8 = sphi 0, %s12
    %p9 = scmp.ge.s32.totalorder %s8, 4
    %s18 = sphi 0, %s20
    %s21 = sphi 0, %s18
    %s22 = sphi 0, %s21
    %s38 = sphi 0, %s22
    %s44 = sphi 0, %s46
    %s47 = sphi 0, %s44
    %s48 = sphi 0, %s47
    %s64 = sphi 0, %s48
    %s70 = sphi 0, %s72
    %s73 = sphi 0, %s70
    %s74 = sphi 0, %s73
    %s90 = sphi 0, %s74
  $region4: #{_charbonnier_jit.1} parent=0 // loop_header_branch
    %11 = sbr.rel (%p9) target = $region8
  $region5: #{_charbonnier_jit.1} parent=0 // loop_body
    %s13 = ssub.s32 %s8, 1
    %s14 = ssub.s32 %s8, 2
    %s15 = sadd.s32 %s8, 1
    %s16 = ssub.s32 %s8, %s15
    %p17 = scmp.eq.s32.totalorder %s16, 0
    %s19 = sadd.s32 %s18, 1
    %s20 = scalar_select %p17, %s18, %s19
    %p23 = pneg %p17
    %p24 = scmp.eq.s32.totalorder %s8, 1
    %p25 = por %p23, %p24
    %p26 = scmp.ne.s32.totalorder %s18, %s21
    %p27 = scmp.eq.s32.totalorder %s8, 0
    %p28 = por %p26, %p27
    %p29 = scmp.ne.s32.totalorder %s18, %s21
    %p30 = scmp.eq.s32.totalorder %s13, 1
    %p31 = por %p29, %p30
    %p32 = scmp.ne.s32.totalorder %s21, %s22
    %p33 = scmp.eq.s32.totalorder %s13, 0
    %p34 = por %p32, %p33
    %p35 = scmp.ne.s32.totalorder %s21, %s22
    %p36 = scmp.eq.s32.totalorder %s14, 1
    %p37 = por %p35, %p36
    %p39 = scmp.ne.s32.totalorder %s22, %s38
    %p40 = scmp.eq.s32.totalorder %s14, 0
    %p41 = por %p39, %p40
    %s42 = ssub.s32 %s8, %s15
    %p43 = scmp.eq.s32.totalorder %s42, 0
    %s45 = sadd.s32 %s44, 1
    %s46 = scalar_select %p43, %s44, %s45
    %p49 = pneg %p43
    %p50 = scmp.eq.s32.totalorder %s8, 1
    %p51 = por %p49, %p50
    %p52 = scmp.ne.s32.totalorder %s44, %s47
    %p53 = scmp.eq.s32.totalorder %s8, 0
    %p54 = por %p52, %p53
    %p55 = scmp.ne.s32.totalorder %s44, %s47
    %p56 = scmp.eq.s32.totalorder %s13, 1
    %p57 = por %p55, %p56
    %p58 = scmp.ne.s32.totalorder %s47, %s48
    %p59 = scmp.eq.s32.totalorder %s13, 0
    %p60 = por %p58, %p59
    %p61 = scmp.ne.s32.totalorder %s47, %s48
    %p62 = scmp.eq.s32.totalorder %s14, 1
    %p63 = por %p61, %p62
    %p65 = scmp.ne.s32.totalorder %s48, %s64
    %p66 = scmp.eq.s32.totalorder %s14, 0
    %p67 = por %p65, %p66
    %s68 = ssub.s32 %s8, %s15
    %p69 = scmp.eq.s32.totalorder %s68, 0
    %s71 = sadd.s32 %s70, 1
    %s72 = scalar_select %p69, %s70, %s71
    %p75 = pneg %p69
    %p76 = scmp.eq.s32.totalorder %s8, 1
    %p77 = por %p75, %p76
    %p78 = scmp.ne.s32.totalorder %s70, %s73
    %p79 = scmp.eq.s32.totalorder %s8, 0
    %p80 = por %p78, %p79
    %p81 = scmp.ne.s32.totalorder %s70, %s73
    %p82 = scmp.eq.s32.totalorder %s13, 1
    %p83 = por %p81, %p82
    %p84 = scmp.ne.s32.totalorder %s73, %s74
    %p85 = scmp.eq.s32.totalorder %s13, 0
    %p86 = por %p84, %p85
    %p87 = scmp.ne.s32.totalorder %s73, %s74
    %p88 = scmp.eq.s32.totalorder %s14, 1
    %p89 = por %p87, %p88
    %p91 = scmp.ne.s32.totalorder %s74, %s90
    %p92 = scmp.eq.s32.totalorder %s14, 0
    %p93 = por %p91, %p92
    %p94 = scmp.le.s32.totalorder 1, %s8
    %p95 = scmp.lt.s32.totalorder %s8, 3
    %p96 = pnand %p94, %p95
    %p97 = pneg %p96
    // Predicated region
    $region9: #{_charbonnier_jit.1} parent=5 // pred_check
      _
    $region10: #{_charbonnier_jit.1} parent=5 // pred_check_branch
      %99 = sbr.rel (%p96) target = $region12
    $region11: #{_charbonnier_jit.1} parent=5 // pred_region
      %s100 = ssub.s32 %s8, 1
    $region12: #{_charbonnier_jit.1} parent=5 // pred_fallthru
      _
    %p101 = scmp.lt.s32.totalorder %s8, 2
    // Predicated region
    $region13: #{_charbonnier_jit.1} parent=5 // pred_check
      %p102 = pneg %p101
    $region14: #{_charbonnier_jit.1} parent=5 // pred_check_branch
      %104 = sbr.rel (%p102) target = $region16
    $region15: #{_charbonnier_jit.1} parent=5 // pred_region
      // Predicated region
      $region17: #{_charbonnier_jit.1} parent=15 // pred_check
        %p105 = pneg %p28
      $region18: #{_charbonnier_jit.1} parent=15 // pred_check_branch
        %107 = sbr.rel (%p105) target = $region20
      $region19: #{_charbonnier_jit.1} parent=15 // pred_region
        %p108 = scmp.lt.s32.totalorder %s8, 1
        %s109 = scalar_select %p108, %s8, 1
        %s110 = smul.addr %s109, 8
        %s111 = scalar_lea.vmem %s0, %s110
      $region20: #{_charbonnier_jit.1} parent=15 // pred_fallthru
        _
      // Predicated region
      $region21: #{_charbonnier_jit.1} parent=15 // pred_check
        %p112 = pneg %p54
      $region22: #{_charbonnier_jit.1} parent=15 // pred_check_branch
        %114 = sbr.rel (%p112) target = $region24
      $region23: #{_charbonnier_jit.1} parent=15 // pred_region
        %p115 = scmp.lt.s32.totalorder %s8, 1
        %s116 = scalar_select %p115, %s8, 1
        %s117 = smul.addr %s116, 8
        %s118 = scalar_lea.vmem %s1, %s117
      $region24: #{_charbonnier_jit.1} parent=15 // pred_fallthru
        _
    $region16: #{_charbonnier_jit.1} parent=5 // pred_fallthru
      _
    %p119 = scmp.le.s32.totalorder 1, %s8
    %p120 = scmp.lt.s32.totalorder %s8, 3
    %p121 = pnand %p119, %p120
    %p122 = pneg %p121
    // Predicated region
    $region25: #{_charbonnier_jit.1} parent=5 // pred_check
      _
    $region26: #{_charbonnier_jit.1} parent=5 // pred_check_branch
      %124 = sbr.rel (%p121) target = $region28
    $region27: #{_charbonnier_jit.1} parent=5 // pred_region
      %s125 = ssub.s32 %s8, 1
      %p126 = scmp.lt.s32.totalorder %s13, 1
      %s127 = scalar_select %p126, %s13, 1
      %s128 = smul.addr %s127, 8
      %s129 = scalar_lea.vmem %s0, %s128
      %p130 = pneg %p34
      %p131 = pneg %p31
      %p132 = scmp.lt.s32.totalorder %s13, 1
      %s133 = scalar_select %p132, %s13, 1
      %s134 = smul.addr %s133, 8
      %s135 = scalar_lea.vmem %s1, %s134
      %p136 = pneg %p60
      %p137 = pneg %p57
      %p138 = pneg %p86
      %p139 = pneg %p83
      %p140 = scmp.lt.s32.totalorder %s13, 1
      %s141 = scalar_select %p140, %s13, 1
      %s142 = smul.addr %s141, 8
      %s143 = scalar_lea.vmem %s2, %s142
      %p144 = scmp.lt.s32.totalorder %s13, 1
      %s145 = scalar_select %p144, %s13, 1
      %s146 = smul.addr %s145, 8
      %s147 = scalar_lea.vmem %s0, %s146
      %p148 = scmp.lt.s32.totalorder %s13, 1
      %s149 = scalar_select %p148, %s13, 1
      %s150 = smul.addr %s149, 8
      %s151 = scalar_lea.vmem %s1, %s150
      %p152 = scmp.lt.s32.totalorder %s13, 1
      %s153 = scalar_select %p152, %s13, 1
      %s154 = smul.addr %s153, 8
      %s155 = scalar_lea.vmem %s2, %s154
      %v156 = vld [vmem:[%s147] sm:$0xff]
      %v157 = vld [vmem:[%s151] sm:$0xff]
      %v158 = vsub.f32 %v156, %v157
      %v159 = vmul.f32 %v158, %v158
      %v160 = vadd.f32 %v159, 1e-12
      %v161 = vrsqrt.pop %v160
      %v162 = vmul.f32 %v161, %v160
      %v163 = vmul.f32 %v162, %v161
      %v164 = vmul.f32 0.5, %v163
      %v165 = vsub.f32 1.5, %v164
      %v166 = vmul.f32 %v161, %v165
      %v167 = vmul.f32 %v160, %v166
      %vm168 = vcmp.eq.f32.partialorder %v160, inf
      %v169 = vsel %vm168, %v160, %v167
      %vm170 = vcmp.eq.f32.partialorder %v160, 0.0
      %v171 = vand.u32 %v160, 2147483648
      %v172 = vsel %vm170, %v171, %v169
      %v173 = vadd.f32 %v172, 0.0
      %174 = vst [vmem:[%s155] sm:$0xff] %v173
      %p175 = scmp.lt.s32.totalorder %s13, 1
      %s176 = scalar_select %p175, %s13, 1
      %s177 = smul.addr %s176, 8
      %s178 = scalar_lea.vmem %s2, %s177
      // Predicated region
      $region29: #{_charbonnier_jit.1} parent=27 // pred_check
        %p179 = pneg %p83
      $region30: #{_charbonnier_jit.1} parent=27 // pred_check_branch
        %181 = sbr.rel (%p179) target = $region32
      $region31: #{_charbonnier_jit.1} parent=27 // pred_region
        _
      $region32: #{_charbonnier_jit.1} parent=27 // pred_fallthru
        _
    $region28: #{_charbonnier_jit.1} parent=5 // pred_fallthru
      _
    %p182 = scmp.le.s32.totalorder 2, %s8
    // Predicated region
    $region33: #{_charbonnier_jit.1} parent=5 // pred_check
      %p183 = pneg %p182
    $region34: #{_charbonnier_jit.1} parent=5 // pred_check_branch
      %185 = sbr.rel (%p183) target = $region36
    $region35: #{_charbonnier_jit.1} parent=5 // pred_region
      %s186 = ssub.s32 %s8, 2
      // Predicated region
      $region37: #{_charbonnier_jit.1} parent=35 // pred_check
        %p187 = pneg %p89
      $region38: #{_charbonnier_jit.1} parent=35 // pred_check_branch
        %189 = sbr.rel (%p187) target = $region40
      $region39: #{_charbonnier_jit.1} parent=35 // pred_region
        %p190 = scmp.lt.s32.totalorder %s14, 1
        %s191 = scalar_select %p190, %s14, 1
        %s192 = smul.addr %s191, 8
        %s193 = scalar_lea.vmem %s2, %s192
      $region40: #{_charbonnier_jit.1} parent=35 // pred_fallthru
        _
    $region36: #{_charbonnier_jit.1} parent=5 // pred_fallthru
      _
  $region6: #{_charbonnier_jit.1} parent=0 // loop_footer
    %s12 = sadd.s32 1, %s8
  $region7: #{_charbonnier_jit.1} parent=0 // loop_footer_branch
    %7 = sbr.rel target = $region3
  $region8: #{_charbonnier_jit.1} parent=0 // loop_exit
    _

</llo_original>
